<compile_context>
chip_gen: v7x
topology: tpu7x:2x2x1
jax: 0.10.0
libtpu: 0.0.40
codegen_flags: <defaults>
</compile_context>

<pallas_src>
import jax
import jax.numpy as jnp
from jax.experimental import pallas as pl
from jax.experimental.pallas import tpu as pltpu


def _make_phase_shuffle_kernel(shift_factor, b_tile, T):
    S = shift_factor

    def kernel(k_ref, x_ref, o_ref):
        # k_ref : SMEM int32[B]              scalar-prefetched per-batch shifts
        # x_ref : VMEM (b_tile, c_tile, T)   unpadded input block
        # o_ref : VMEM (b_tile, c_tile, T)   output block
        base = pl.program_id(0) * b_tile
        for i in range(b_tile):                  # static unroll over batch rows
            k_i = k_ref[base + i]
            x = x_ref[i]                         # (c_tile, T), loaded once
            for kk in range(-S, S + 1):          # static unroll over shift values
                @pl.when(k_i == kk)
                def _(x=x, i=i, kk=kk):
                    # All slices below are static; only the taken branch runs.
                    if kk > 0:
                        # out[t] = x[kk - t]  for t <  kk   (reflected head)
                        # out[t] = x[t - kk]  for t >= kk   (shift right)
                        pieces = [x[:, j:j + 1] for j in range(kk, 0, -1)]
                        pieces.append(x[:, :T - kk])
                        out = jnp.concatenate(pieces, axis=-1)
                    elif kk < 0:
                        m = -kk
                        # out[t] = x[t + m]              for t <= T-1-m (shift left)
                        # out[t] = x[2(T-1) - t - m]     for t >  T-1-m (reflected tail)
                        pieces = [x[:, m:]]
                        pieces.extend(x[:, T - 1 - j:T - j] for j in range(1, m + 1))
                        out = jnp.concatenate(pieces, axis=-1)
                    else:
                        out = x
                    o_ref[i] = out               # one dense, lane-aligned store

    return kernel


def _multi_tensorcore():
    """True only on chips with 2 TensorCores per device (v7x)."""
    try:
        kind = jax.devices()[0].device_kind.lower()
    except Exception:
        return False
    return ("v7" in kind) or ("7x" in kind)


def _pick_tiles(B, C, T, itemsize, target_bytes=4 << 20, multi_tc=False):
    """Pick (b_tile, c_tile) so a block is <= ~target_bytes.

    Prefers full-C batch tiles; falls back to tiling C (in multiples of 8 to
    respect the (8,128) block constraint) when one batch row is too big.
    Only on multi-TC chips do we force >= 2 grid steps so both cores get work.
    """
    divs_b = [d for d in range(1, B + 1) if B % d == 0]
    divs_c = [d for d in range(1, C + 1) if C % d == 0]
    row_bytes = C * T * itemsize

    fit_b = [d for d in divs_b if d * row_bytes <= target_bytes]
    if fit_b:
        b_tile, c_tile = max(fit_b), C
    else:
        b_tile = 1
        fit_c = [d for d in divs_c
                 if d % 8 == 0 and d * T * itemsize <= target_bytes]
        c_tile = max(fit_c) if fit_c else C

    if multi_tc and (B // b_tile) * (C // c_tile) < 2:
        if B > 1:
            b_tile = max(d for d in divs_b if B // d >= 2)
        else:
            half = [d for d in divs_c if C // d >= 2 and d % 8 == 0]
            if half:
                c_tile = max(half)
    return b_tile, c_tile


def phase_shuffle(x, shift_factor, key):
    """PhaseShuffle forward. x: (B, C, T). Always returns (out, shifts)."""
    B, C, T = x.shape
    S = int(shift_factor)
    if S == 0:
        return x, jnp.zeros((B,), jnp.int32)
    if not (1 <= S <= T - 1):
        raise ValueError(f"shift_factor must be in [1, T-1]; got {S} with T={T}")

    # Random shift in {-S, ..., +S}, one per batch element; clamp for safety
    # (a shift outside [-S, S] would otherwise skip every branch).
    shifts = jax.random.randint(key, (B,), -S, S + 1, dtype=jnp.int32)
    shifts = jnp.clip(shifts, -S, S)

    itemsize = x.dtype.itemsize
    b_tile, c_tile = _pick_tiles(B, C, T, itemsize, multi_tc=_multi_tensorcore())
    grid = (B // b_tile, C // c_tile)

    block_bytes = b_tile * c_tile * T * itemsize
    # Double-buffered in + out blocks plus headroom; keep within every chip's
    # budget (v5e scoped default 16 MiB, v7x physical 64 MiB).
    vmem_limit = int(min(max(4 * block_bytes + (2 << 20), 16 << 20), 32 << 20))

    out = pl.pallas_call(
        _make_phase_shuffle_kernel(S, b_tile, T),
        out_shape=jax.ShapeDtypeStruct((B, C, T), x.dtype),
        grid_spec=pltpu.PrefetchScalarGridSpec(
            num_scalar_prefetch=1,
            grid=grid,
            in_specs=[pl.BlockSpec((b_tile, c_tile, T), lambda b, c, k: (b, c, 0))],
            out_specs=pl.BlockSpec((b_tile, c_tile, T), lambda b, c, k: (b, c, 0)),
        ),
        compiler_params=pltpu.CompilerParams(
            dimension_semantics=("parallel", "parallel"),
            vmem_limit_bytes=vmem_limit,
        ),
        cost_estimate=pl.CostEstimate(
            flops=0, transcendentals=0,
            bytes_accessed=2 * B * C * T * itemsize),
    )(shifts, x)
    return out, shifts


def _reference(x, shifts):
    """Pure-JAX reference of the reflect-shift, for validation."""
    B, C, T = x.shape
    t = jnp.arange(T)[None, :]                        # (1, T)
    src = t - shifts[:, None]                         # (B, T)
    src = jnp.where(src < 0, -src, src)
    src = jnp.where(src > T - 1, 2 * (T - 1) - src, src)
    idx = jnp.broadcast_to(src[:, None, :], (B, C, T))
    return jnp.take_along_axis(x, idx, axis=-1)


if __name__ == "__main__":
    key = jax.random.PRNGKey(0)

    # Small WaveGAN-like shapes; second case exercises b_tile > 1 grouping
    # and a larger shift factor.
    for case_idx, (B, C, T, S) in enumerate([(2, 8, 128, 2), (4, 4, 256, 3)]):
        k_case = jax.random.fold_in(key, case_idx)
        k_data, k_shift = jax.random.split(k_case)
        x = jax.random.normal(k_data, (B, C, T), dtype=jnp.float32)

        out, shifts = phase_shuffle(x, S, k_shift)
        out = jax.block_until_ready(out)

        ref = _reference(x, shifts)
        assert out.shape == x.shape and out.dtype == x.dtype
        assert jnp.allclose(out, ref), f"mismatch vs reference for {(B, C, T, S)}"

    # shift_factor == 0 fast path: consistent (out, shifts) tuple, identity out.
    k_data0, k_shift0 = jax.random.split(key)
    x0 = jax.random.normal(k_data0, (2, 8, 128), dtype=jnp.float32)
    out0, shifts0 = phase_shuffle(x0, 0, k_shift0)
    assert jnp.array_equal(out0, x0) and shifts0.shape == (2,)

    print("KERNEL_OK")
</pallas_src>

<mosaic_0001>
module attributes {stable_mosaic.version = 11 : i64} {
  func.func @kernel(%arg0: i32, %arg1: i32, %arg2: memref<2xi32, #tpu.memory_space<smem>>, %arg3: memref<2x8x128xf32, #tpu.memory_space<vmem>>, %arg4: memref<2x8x128xf32, #tpu.memory_space<vmem>>) attributes {dimension_semantics = [#tpu.dimension_semantics<parallel>, #tpu.dimension_semantics<parallel>], iteration_bounds = array<i64: 1, 1>, scalar_prefetch = 1 : i64, scratch_operands = 0 : i64, tpu.core_type = #tpu.core_type<tc>, window_params = [{transform_indices = @transform_0, window_bounds = array<i64: 2, 8, 128>}, {transform_indices = @transform_1, window_bounds = array<i64: 2, 8, 128>}]} {
    %c2_i32 = arith.constant 2 : i32
    %0 = arith.muli %arg0, %c2_i32 : i32
    %c0_i32 = arith.constant 0 : i32
    %1 = arith.addi %0, %c0_i32 : i32
    %2 = arith.index_cast %1 : i32 to index
    %3 = memref.load %arg2[%2] : memref<2xi32, #tpu.memory_space<smem>>
    %c0 = arith.constant 0 : index
    %c0_0 = arith.constant 0 : index
    %c0_1 = arith.constant 0 : index
    %4 = vector.load %arg3[%c0, %c0_0, %c0_1] : memref<2x8x128xf32, #tpu.memory_space<vmem>>, vector<1x8x128xf32>
    %5 = vector.shape_cast %4 : vector<1x8x128xf32> to vector<8x128xf32>
    %c-2_i32 = arith.constant -2 : i32
    %6 = arith.cmpi eq, %3, %c-2_i32 : i32
    %7 = arith.extui %6 : i1 to i32
    %c0_i32_2 = arith.constant 0 : i32
    %8 = arith.cmpi ne, %7, %c0_i32_2 : i32
    scf.if %8 {
      %41 = vector.extract_strided_slice %5 {offsets = [0, 2], sizes = [8, 126], strides = [1, 1]} : vector<8x128xf32> to vector<8x126xf32>
      %42 = vector.extract_strided_slice %5 {offsets = [0, 126], sizes = [8, 1], strides = [1, 1]} : vector<8x128xf32> to vector<8x1xf32>
      %43 = vector.extract_strided_slice %5 {offsets = [0, 125], sizes = [8, 1], strides = [1, 1]} : vector<8x128xf32> to vector<8x1xf32>
      %44 = tpu.concatenate %41, %42, %43 in 1 : vector<8x126xf32>, vector<8x1xf32>, vector<8x1xf32> -> vector<8x128xf32>
      %c0_22 = arith.constant 0 : index
      %c0_23 = arith.constant 0 : index
      %c0_24 = arith.constant 0 : index
      %45 = vector.load %arg4[%c0_22, %c0_23, %c0_24] : memref<2x8x128xf32, #tpu.memory_space<vmem>>, vector<1x8x128xf32>
      %46 = vector.shape_cast %45 : vector<1x8x128xf32> to vector<8x128xf32>
      %47 = vector.shape_cast %44 : vector<8x128xf32> to vector<1x8x128xf32>
      tpu.vector_store %arg4[%c0_22, %c0_23, %c0_24], %47 {strides = array<i32>} : memref<2x8x128xf32, #tpu.memory_space<vmem>>, vector<1x8x128xf32>,
    } else {
    }
    %c-1_i32 = arith.constant -1 : i32
    %9 = arith.cmpi eq, %3, %c-1_i32 : i32
    %10 = arith.extui %9 : i1 to i32
    %c0_i32_3 = arith.constant 0 : i32
    %11 = arith.cmpi ne, %10, %c0_i32_3 : i32
    scf.if %11 {
      %41 = vector.extract_strided_slice %5 {offsets = [0, 1], sizes = [8, 127], strides = [1, 1]} : vector<8x128xf32> to vector<8x127xf32>
      %42 = vector.extract_strided_slice %5 {offsets = [0, 126], sizes = [8, 1], strides = [1, 1]} : vector<8x128xf32> to vector<8x1xf32>
      %43 = tpu.concatenate %41, %42 in 1 : vector<8x127xf32>, vector<8x1xf32> -> vector<8x128xf32>
      %c0_22 = arith.constant 0 : index
      %c0_23 = arith.constant 0 : index
      %c0_24 = arith.constant 0 : index
      %44 = vector.load %arg4[%c0_22, %c0_23, %c0_24] : memref<2x8x128xf32, #tpu.memory_space<vmem>>, vector<1x8x128xf32>
      %45 = vector.shape_cast %44 : vector<1x8x128xf32> to vector<8x128xf32>
      %46 = vector.shape_cast %43 : vector<8x128xf32> to vector<1x8x128xf32>
      tpu.vector_store %arg4[%c0_22, %c0_23, %c0_24], %46 {strides = array<i32>} : memref<2x8x128xf32, #tpu.memory_space<vmem>>, vector<1x8x128xf32>,
    } else {
    }
    %c0_i32_4 = arith.constant 0 : i32
    %12 = arith.cmpi eq, %3, %c0_i32_4 : i32
    %13 = arith.extui %12 : i1 to i32
    %c0_i32_5 = arith.constant 0 : i32
    %14 = arith.cmpi ne, %13, %c0_i32_5 : i32
    scf.if %14 {
      %c0_22 = arith.constant 0 : index
      %c0_23 = arith.constant 0 : index
      %c0_24 = arith.constant 0 : index
      %41 = vector.load %arg4[%c0_22, %c0_23, %c0_24] : memref<2x8x128xf32, #tpu.memory_space<vmem>>, vector<1x8x128xf32>
      %42 = vector.shape_cast %41 : vector<1x8x128xf32> to vector<8x128xf32>
      %43 = vector.shape_cast %5 : vector<8x128xf32> to vector<1x8x128xf32>
      tpu.vector_store %arg4[%c0_22, %c0_23, %c0_24], %43 {strides = array<i32>} : memref<2x8x128xf32, #tpu.memory_space<vmem>>, vector<1x8x128xf32>,
    } else {
    }
    %c1_i32 = arith.constant 1 : i32
    %15 = arith.cmpi eq, %3, %c1_i32 : i32
    %16 = arith.extui %15 : i1 to i32
    %c0_i32_6 = arith.constant 0 : i32
    %17 = arith.cmpi ne, %16, %c0_i32_6 : i32
    scf.if %17 {
      %41 = vector.extract_strided_slice %5 {offsets = [0, 1], sizes = [8, 1], strides = [1, 1]} : vector<8x128xf32> to vector<8x1xf32>
      %42 = vector.extract_strided_slice %5 {offsets = [0, 0], sizes = [8, 127], strides = [1, 1]} : vector<8x128xf32> to vector<8x127xf32>
      %43 = tpu.concatenate %41, %42 in 1 : vector<8x1xf32>, vector<8x127xf32> -> vector<8x128xf32>
      %c0_22 = arith.constant 0 : index
      %c0_23 = arith.constant 0 : index
      %c0_24 = arith.constant 0 : index
      %44 = vector.load %arg4[%c0_22, %c0_23, %c0_24] : memref<2x8x128xf32, #tpu.memory_space<vmem>>, vector<1x8x128xf32>
      %45 = vector.shape_cast %44 : vector<1x8x128xf32> to vector<8x128xf32>
      %46 = vector.shape_cast %43 : vector<8x128xf32> to vector<1x8x128xf32>
      tpu.vector_store %arg4[%c0_22, %c0_23, %c0_24], %46 {strides = array<i32>} : memref<2x8x128xf32, #tpu.memory_space<vmem>>, vector<1x8x128xf32>,
    } else {
    }
    %c2_i32_7 = arith.constant 2 : i32
    %18 = arith.cmpi eq, %3, %c2_i32_7 : i32
    %19 = arith.extui %18 : i1 to i32
    %c0_i32_8 = arith.constant 0 : i32
    %20 = arith.cmpi ne, %19, %c0_i32_8 : i32
    scf.if %20 {
      %41 = vector.extract_strided_slice %5 {offsets = [0, 2], sizes = [8, 1], strides = [1, 1]} : vector<8x128xf32> to vector<8x1xf32>
      %42 = vector.extract_strided_slice %5 {offsets = [0, 1], sizes = [8, 1], strides = [1, 1]} : vector<8x128xf32> to vector<8x1xf32>
      %43 = vector.extract_strided_slice %5 {offsets = [0, 0], sizes = [8, 126], strides = [1, 1]} : vector<8x128xf32> to vector<8x126xf32>
      %44 = tpu.concatenate %41, %42, %43 in 1 : vector<8x1xf32>, vector<8x1xf32>, vector<8x126xf32> -> vector<8x128xf32>
      %c0_22 = arith.constant 0 : index
      %c0_23 = arith.constant 0 : index
      %c0_24 = arith.constant 0 : index
      %45 = vector.load %arg4[%c0_22, %c0_23, %c0_24] : memref<2x8x128xf32, #tpu.memory_space<vmem>>, vector<1x8x128xf32>
      %46 = vector.shape_cast %45 : vector<1x8x128xf32> to vector<8x128xf32>
      %47 = vector.shape_cast %44 : vector<8x128xf32> to vector<1x8x128xf32>
      tpu.vector_store %arg4[%c0_22, %c0_23, %c0_24], %47 {strides = array<i32>} : memref<2x8x128xf32, #tpu.memory_space<vmem>>, vector<1x8x128xf32>,
    } else {
    }
    %c1_i32_9 = arith.constant 1 : i32
    %21 = arith.addi %0, %c1_i32_9 : i32
    %22 = arith.index_cast %21 : i32 to index
    %23 = memref.load %arg2[%22] : memref<2xi32, #tpu.memory_space<smem>>
    %c1 = arith.constant 1 : index
    %c0_10 = arith.constant 0 : index
    %c0_11 = arith.constant 0 : index
    %24 = vector.load %arg3[%c1, %c0_10, %c0_11] : memref<2x8x128xf32, #tpu.memory_space<vmem>>, vector<1x8x128xf32>
    %25 = vector.shape_cast %24 : vector<1x8x128xf32> to vector<8x128xf32>
    %c-2_i32_12 = arith.constant -2 : i32
    %26 = arith.cmpi eq, %23, %c-2_i32_12 : i32
    %27 = arith.extui %26 : i1 to i32
    %c0_i32_13 = arith.constant 0 : i32
    %28 = arith.cmpi ne, %27, %c0_i32_13 : i32
    scf.if %28 {
      %41 = vector.extract_strided_slice %25 {offsets = [0, 2], sizes = [8, 126], strides = [1, 1]} : vector<8x128xf32> to vector<8x126xf32>
      %42 = vector.extract_strided_slice %25 {offsets = [0, 126], sizes = [8, 1], strides = [1, 1]} : vector<8x128xf32> to vector<8x1xf32>
      %43 = vector.extract_strided_slice %25 {offsets = [0, 125], sizes = [8, 1], strides = [1, 1]} : vector<8x128xf32> to vector<8x1xf32>
      %44 = tpu.concatenate %41, %42, %43 in 1 : vector<8x126xf32>, vector<8x1xf32>, vector<8x1xf32> -> vector<8x128xf32>
      %c1_22 = arith.constant 1 : index
      %c0_23 = arith.constant 0 : index
      %c0_24 = arith.constant 0 : index
      %45 = vector.load %arg4[%c1_22, %c0_23, %c0_24] : memref<2x8x128xf32, #tpu.memory_space<vmem>>, vector<1x8x128xf32>
      %46 = vector.shape_cast %45 : vector<1x8x128xf32> to vector<8x128xf32>
      %47 = vector.shape_cast %44 : vector<8x128xf32> to vector<1x8x128xf32>
      tpu.vector_store %arg4[%c1_22, %c0_23, %c0_24], %47 {strides = array<i32>} : memref<2x8x128xf32, #tpu.memory_space<vmem>>, vector<1x8x128xf32>,
    } else {
    }
    %c-1_i32_14 = arith.constant -1 : i32
    %29 = arith.cmpi eq, %23, %c-1_i32_14 : i32
    %30 = arith.extui %29 : i1 to i32
    %c0_i32_15 = arith.constant 0 : i32
    %31 = arith.cmpi ne, %30, %c0_i32_15 : i32
    scf.if %31 {
      %41 = vector.extract_strided_slice %25 {offsets = [0, 1], sizes = [8, 127], strides = [1, 1]} : vector<8x128xf32> to vector<8x127xf32>
      %42 = vector.extract_strided_slice %25 {offsets = [0, 126], sizes = [8, 1], strides = [1, 1]} : vector<8x128xf32> to vector<8x1xf32>
      %43 = tpu.concatenate %41, %42 in 1 : vector<8x127xf32>, vector<8x1xf32> -> vector<8x128xf32>
      %c1_22 = arith.constant 1 : index
      %c0_23 = arith.constant 0 : index
      %c0_24 = arith.constant 0 : index
      %44 = vector.load %arg4[%c1_22, %c0_23, %c0_24] : memref<2x8x128xf32, #tpu.memory_space<vmem>>, vector<1x8x128xf32>
      %45 = vector.shape_cast %44 : vector<1x8x128xf32> to vector<8x128xf32>
      %46 = vector.shape_cast %43 : vector<8x128xf32> to vector<1x8x128xf32>
      tpu.vector_store %arg4[%c1_22, %c0_23, %c0_24], %46 {strides = array<i32>} : memref<2x8x128xf32, #tpu.memory_space<vmem>>, vector<1x8x128xf32>,
    } else {
    }
    %c0_i32_16 = arith.constant 0 : i32
    %32 = arith.cmpi eq, %23, %c0_i32_16 : i32
    %33 = arith.extui %32 : i1 to i32
    %c0_i32_17 = arith.constant 0 : i32
    %34 = arith.cmpi ne, %33, %c0_i32_17 : i32
    scf.if %34 {
      %c1_22 = arith.constant 1 : index
      %c0_23 = arith.constant 0 : index
      %c0_24 = arith.constant 0 : index
      %41 = vector.load %arg4[%c1_22, %c0_23, %c0_24] : memref<2x8x128xf32, #tpu.memory_space<vmem>>, vector<1x8x128xf32>
      %42 = vector.shape_cast %41 : vector<1x8x128xf32> to vector<8x128xf32>
      %43 = vector.shape_cast %25 : vector<8x128xf32> to vector<1x8x128xf32>
      tpu.vector_store %arg4[%c1_22, %c0_23, %c0_24], %43 {strides = array<i32>} : memref<2x8x128xf32, #tpu.memory_space<vmem>>, vector<1x8x128xf32>,
    } else {
    }
    %c1_i32_18 = arith.constant 1 : i32
    %35 = arith.cmpi eq, %23, %c1_i32_18 : i32
    %36 = arith.extui %35 : i1 to i32
    %c0_i32_19 = arith.constant 0 : i32
    %37 = arith.cmpi ne, %36, %c0_i32_19 : i32
    scf.if %37 {
      %41 = vector.extract_strided_slice %25 {offsets = [0, 1], sizes = [8, 1], strides = [1, 1]} : vector<8x128xf32> to vector<8x1xf32>
      %42 = vector.extract_strided_slice %25 {offsets = [0, 0], sizes = [8, 127], strides = [1, 1]} : vector<8x128xf32> to vector<8x127xf32>
      %43 = tpu.concatenate %41, %42 in 1 : vector<8x1xf32>, vector<8x127xf32> -> vector<8x128xf32>
      %c1_22 = arith.constant 1 : index
      %c0_23 = arith.constant 0 : index
      %c0_24 = arith.constant 0 : index
      %44 = vector.load %arg4[%c1_22, %c0_23, %c0_24] : memref<2x8x128xf32, #tpu.memory_space<vmem>>, vector<1x8x128xf32>
      %45 = vector.shape_cast %44 : vector<1x8x128xf32> to vector<8x128xf32>
      %46 = vector.shape_cast %43 : vector<8x128xf32> to vector<1x8x128xf32>
      tpu.vector_store %arg4[%c1_22, %c0_23, %c0_24], %46 {strides = array<i32>} : memref<2x8x128xf32, #tpu.memory_space<vmem>>, vector<1x8x128xf32>,
    } else {
    }
    %c2_i32_20 = arith.constant 2 : i32
    %38 = arith.cmpi eq, %23, %c2_i32_20 : i32
    %39 = arith.extui %38 : i1 to i32
    %c0_i32_21 = arith.constant 0 : i32
    %40 = arith.cmpi ne, %39, %c0_i32_21 : i32
    scf.if %40 {
      %41 = vector.extract_strided_slice %25 {offsets = [0, 2], sizes = [8, 1], strides = [1, 1]} : vector<8x128xf32> to vector<8x1xf32>
      %42 = vector.extract_strided_slice %25 {offsets = [0, 1], sizes = [8, 1], strides = [1, 1]} : vector<8x128xf32> to vector<8x1xf32>
      %43 = vector.extract_strided_slice %25 {offsets = [0, 0], sizes = [8, 126], strides = [1, 1]} : vector<8x128xf32> to vector<8x126xf32>
      %44 = tpu.concatenate %41, %42, %43 in 1 : vector<8x1xf32>, vector<8x1xf32>, vector<8x126xf32> -> vector<8x128xf32>
      %c1_22 = arith.constant 1 : index
      %c0_23 = arith.constant 0 : index
      %c0_24 = arith.constant 0 : index
      %45 = vector.load %arg4[%c1_22, %c0_23, %c0_24] : memref<2x8x128xf32, #tpu.memory_space<vmem>>, vector<1x8x128xf32>
      %46 = vector.shape_cast %45 : vector<1x8x128xf32> to vector<8x128xf32>
      %47 = vector.shape_cast %44 : vector<8x128xf32> to vector<1x8x128xf32>
      tpu.vector_store %arg4[%c1_22, %c0_23, %c0_24], %47 {strides = array<i32>} : memref<2x8x128xf32, #tpu.memory_space<vmem>>, vector<1x8x128xf32>,
    } else {
    }
    return
  }
  func.func @transform_0(%arg0: i32, %arg1: i32, %arg2: memref<2xi32, #tpu.memory_space<smem>>) -> (i32, i32, i32) {
    %c0_i32 = arith.constant 0 : i32
    %c0_i32_0 = arith.constant 0 : i32
    return %arg0, %arg1, %c0_i32 : i32, i32, i32
  }
  func.func @transform_1(%arg0: i32, %arg1: i32, %arg2: memref<2xi32, #tpu.memory_space<smem>>) -> (i32, i32, i32) {
    %c0_i32 = arith.constant 0 : i32
    %c0_i32_0 = arith.constant 0 : i32
    return %arg0, %arg1, %c0_i32 : i32, i32, i32
  }
}

</mosaic_0001>

<llo_original>
// kernel: tpu_custom_call.1
$region0: #{tpu_custom_call.1}
  #allocation0 [shape = 'u32[]', space=smem, size = 0x4, offset = 0x4, fixed_abs, tag = 'smem constant byte address 0x4 - core index']
  #allocation1 [shape = 'u32[144,128]{1,0:T(1,128)}', space=vmem, size = 0x12000, scoped, tag = 'internal scratch']
  #allocation2 [shape = 's32[1]{0}', space=sflag, size = 0x4, scoped, tag = 'scoped memory for tpu_custom_call.1']
  #allocation3 [shape = 'u8[512]{0}', space=smem, size = 0x200, scoped, tag = 'prefetched SMEM operand 0']
  %s0 = inlined_call_operand.hbm [shape: s32[2], index: 0, kind: input, shape index: {}]
  %s1 = inlined_call_operand.hbm [shape: f32[2,8,128], index: 1, kind: input, shape index: {}]
  %s2 = inlined_call_operand.hbm [shape: f32[2,8,128], index: 2, kind: output, shape index: {}]
  %s3 = sld [smem:[#allocation0]]
  $region58: #{tpu_custom_call.1} parent=0
    _
  %s5 = ssub.s32 1, %s3
  %s6 = scalar_select 0, %s5, %s3
  %8 = dma.hbm_to_smem %s0, 16, [#allocation3], [#allocation2]
  %9 = dma.done [#allocation2], 16
  %10 = sfence
  $region1: #{tpu_custom_call.1} parent=0
    #allocation4 [shape = 'u8[8192]{0}', space=vmem, size = 0x2000, scoped, tag = 'input window, operand 1, single buffered']
    #allocation5 [shape = 's32[1]{0}', space=sflag, size = 0x4, scoped, tag = 'scoped memory for tpu_custom_call.1']
    #allocation6 [shape = 's32[1]{0}', space=sflag, size = 0x4, scoped, tag = 'scoped memory for tpu_custom_call.1']
    #allocation7 [shape = 'u8[8192]{0}', space=vmem, size = 0x2000, scoped, tag = 'output window, operand 0, single buffered']
    %11 = vsyncpa [#allocation5], 0
    %12 = vsyncpa [#allocation6], 0
    // Predicated region
    $region2: #{tpu_custom_call.1} parent=1 // pred_check
      _
    $region3: #{tpu_custom_call.1} parent=1 // pred_check_branch
      %14 = sbr.rel (0) target = $region5
    $region4: #{tpu_custom_call.1} parent=1 // pred_region
      %s16 = ssub.s32 256, 256
      %17 = vsyncadd [#allocation5], %s16
      %s18 = sshll.u32 [#allocation4], 4
      %s19 = int_to_ptr.vmem [resolvable:$true] %s18
      %24 = dma.hbm_to_vmem [thread:$0]  %s1, 256, %s19, [#allocation5], 128, 128, 8
    $region5: #{tpu_custom_call.1} parent=1 // pred_fallthru
      _
    // Predicated region
    $region6: #{tpu_custom_call.1} parent=1 // pred_check
      _
    $region7: #{tpu_custom_call.1} parent=1 // pred_check_branch
      %26 = sbr.rel (0) target = $region9
    $region8: #{tpu_custom_call.1} parent=1 // pred_region
      %27 = dma.done [#allocation5], 256
    $region9: #{tpu_custom_call.1} parent=1 // pred_fallthru
      _
    %s28 = smul.u32 0, 2
    %s29 = sld [smem:[#allocation3 + %s28]]
    %v30 = vld [vmem:[#allocation4] sm:$0xff]
    %p31 = scmp.eq.s32.totalorder %s29, 4294967294
    // Predicated region
    $region10: #{tpu_custom_call.1} parent=1 // pred_check
      %p32 = pneg %p31
    $region11: #{tpu_custom_call.1} parent=1 // pred_check_branch
      %34 = sbr.rel (%p32) target = $region13
    $region12: #{tpu_custom_call.1} parent=1 // pred_region
      %36 = vrot.lane.b32.xlu0 %v30, 126
      %v37 = vpop.permute.xlu0 %36
      %39 = vrot.lane.b32.xlu0 %v30, 2
      %v40 = vpop.permute.xlu0 %39
      %vm42 = vcmask 1031168
      %v43 = vsel %vm42, %v37, %v30
      %vm44 = vcmask 1039360
      %v45 = vsel %vm44, %v43, %v40
      %46 = vst [vmem:[#allocation7] sm:$0xff] %v45
    $region13: #{tpu_custom_call.1} parent=1 // pred_fallthru
      _
    %p47 = scmp.eq.s32.totalorder %s29, 4294967295
    // Predicated region
    $region14: #{tpu_custom_call.1} parent=1 // pred_check
      %p48 = pneg %p47
    $region15: #{tpu_custom_call.1} parent=1 // pred_check_branch
      %50 = sbr.rel (%p48) target = $region17
    $region16: #{tpu_custom_call.1} parent=1 // pred_region
      %52 = vrot.lane.b32.xlu0 %v30, 127
      %v53 = vpop.permute.xlu0 %52
      %55 = vrot.lane.b32.xlu0 %v30, 1
      %v56 = vpop.permute.xlu0 %55
      %vm58 = vcmask 1039360
      %v59 = vsel %vm58, %v53, %v56
      %60 = vst [vmem:[#allocation7] sm:$0xff] %v59
    $region17: #{tpu_custom_call.1} parent=1 // pred_fallthru
      _
    %p61 = scmp.eq.s32.totalorder %s29, 0
    // Predicated region
    $region18: #{tpu_custom_call.1} parent=1 // pred_check
      %p62 = pneg %p61
    $region19: #{tpu_custom_call.1} parent=1 // pred_check_branch
      %64 = sbr.rel (%p62) target = $region21
    $region20: #{tpu_custom_call.1} parent=1 // pred_region
      %65 = vst [vmem:[#allocation7] sm:$0xff] %v30
    $region21: #{tpu_custom_call.1} parent=1 // pred_fallthru
      _
    %p66 = scmp.eq.s32.totalorder %s29, 1
    // Predicated region
    $region22: #{tpu_custom_call.1} parent=1 // pred_check
      %p67 = pneg %p66
    $region23: #{tpu_custom_call.1} parent=1 // pred_check_branch
      %69 = sbr.rel (%p67) target = $region25
    $region24: #{tpu_custom_call.1} parent=1 // pred_region
      %71 = vrot.lane.b32.xlu0 %v30, 127
      %v72 = vpop.permute.xlu0 %71
      %74 = vrot.lane.b32.xlu0 %v30, 1
      %v75 = vpop.permute.xlu0 %74
      %vm77 = vcmask 7168
      %v78 = vsel %vm77, %v72, %v75
      %79 = vst [vmem:[#allocation7] sm:$0xff] %v78
    $region25: #{tpu_custom_call.1} parent=1 // pred_fallthru
      _
    %p80 = scmp.eq.s32.totalorder %s29, 2
    // Predicated region
    $region26: #{tpu_custom_call.1} parent=1 // pred_check
      %p81 = pneg %p80
    $region27: #{tpu_custom_call.1} parent=1 // pred_check_branch
      %83 = sbr.rel (%p81) target = $region29
    $region28: #{tpu_custom_call.1} parent=1 // pred_region
      %85 = vrot.lane.b32.xlu0 %v30, 126
      %v86 = vpop.permute.xlu0 %85
      %88 = vrot.lane.b32.xlu0 %v30, 2
      %v89 = vpop.permute.xlu0 %88
      %vm91 = vcmask 7168
      %v92 = vsel %vm91, %v86, %v30
      %vm93 = vcmask 15360
      %v94 = vsel %vm93, %v92, %v89
      %95 = vst [vmem:[#allocation7] sm:$0xff] %v94
    $region29: #{tpu_custom_call.1} parent=1 // pred_fallthru
      _
    %s96 = sadd.s32 %s28, 1
    %s97 = sld [smem:[#allocation3 + %s96]]
    %s98 = scalar_lea.vmem [#allocation4], 8
    %v99 = vld [vmem:[%s98] sm:$0xff]
    %p100 = scmp.eq.s32.totalorder %s97, 4294967294
    // Predicated region
    $region30: #{tpu_custom_call.1} parent=1 // pred_check
      %p101 = pneg %p100
    $region31: #{tpu_custom_call.1} parent=1 // pred_check_branch
      %103 = sbr.rel (%p101) target = $region33
    $region32: #{tpu_custom_call.1} parent=1 // pred_region
      %105 = vrot.lane.b32.xlu0 %v99, 126
      %v106 = vpop.permute.xlu0 %105
      %108 = vrot.lane.b32.xlu0 %v99, 2
      %v109 = vpop.permute.xlu0 %108
      %vm111 = vcmask 1031168
      %v112 = vsel %vm111, %v106, %v99
      %vm113 = vcmask 1039360
      %v114 = vsel %vm113, %v112, %v109
      %s115 = scalar_lea.vmem [#allocation7], 8
      %116 = vst [vmem:[%s115] sm:$0xff] %v114
    $region33: #{tpu_custom_call.1} parent=1 // pred_fallthru
      _
    %p117 = scmp.eq.s32.totalorder %s97, 4294967295
    // Predicated region
    $region34: #{tpu_custom_call.1} parent=1 // pred_check
      %p118 = pneg %p117
    $region35: #{tpu_custom_call.1} parent=1 // pred_check_branch
      %120 = sbr.rel (%p118) target = $region37
    $region36: #{tpu_custom_call.1} parent=1 // pred_region
      %122 = vrot.lane.b32.xlu0 %v99, 127
      %v123 = vpop.permute.xlu0 %122
      %125 = vrot.lane.b32.xlu0 %v99, 1
      %v126 = vpop.permute.xlu0 %125
      %vm128 = vcmask 1039360
      %v129 = vsel %vm128, %v123, %v126
      %s130 = scalar_lea.vmem [#allocation7], 8
      %131 = vst [vmem:[%s130] sm:$0xff] %v129
    $region37: #{tpu_custom_call.1} parent=1 // pred_fallthru
      _
    %p132 = scmp.eq.s32.totalorder %s97, 0
    // Predicated region
    $region38: #{tpu_custom_call.1} parent=1 // pred_check
      %p133 = pneg %p132
    $region39: #{tpu_custom_call.1} parent=1 // pred_check_branch
      %135 = sbr.rel (%p133) target = $region41
    $region40: #{tpu_custom_call.1} parent=1 // pred_region
      %s136 = scalar_lea.vmem [#allocation7], 8
      %137 = vst [vmem:[%s136] sm:$0xff] %v99
    $region41: #{tpu_custom_call.1} parent=1 // pred_fallthru
      _
    %p138 = scmp.eq.s32.totalorder %s97, 1
    // Predicated region
    $region42: #{tpu_custom_call.1} parent=1 // pred_check
      %p139 = pneg %p138
    $region43: #{tpu_custom_call.1} parent=1 // pred_check_branch
      %141 = sbr.rel (%p139) target = $region45
    $region44: #{tpu_custom_call.1} parent=1 // pred_region
      %143 = vrot.lane.b32.xlu0 %v99, 127
      %v144 = vpop.permute.xlu0 %143
      %146 = vrot.lane.b32.xlu0 %v99, 1
      %v147 = vpop.permute.xlu0 %146
      %vm149 = vcmask 7168
      %v150 = vsel %vm149, %v144, %v147
      %s151 = scalar_lea.vmem [#allocation7], 8
      %152 = vst [vmem:[%s151] sm:$0xff] %v150
    $region45: #{tpu_custom_call.1} parent=1 // pred_fallthru
      _
    %p153 = scmp.eq.s32.totalorder %s97, 2
    // Predicated region
    $region46: #{tpu_custom_call.1} parent=1 // pred_check
      %p154 = pneg %p153
    $region47: #{tpu_custom_call.1} parent=1 // pred_check_branch
      %156 = sbr.rel (%p154) target = $region49
    $region48: #{tpu_custom_call.1} parent=1 // pred_region
      %158 = vrot.lane.b32.xlu0 %v99, 126
      %v159 = vpop.permute.xlu0 %158
      %161 = vrot.lane.b32.xlu0 %v99, 2
      %v162 = vpop.permute.xlu0 %161
      %vm164 = vcmask 7168
      %v165 = vsel %vm164, %v159, %v99
      %vm166 = vcmask 15360
      %v167 = vsel %vm166, %v165, %v162
      %s168 = scalar_lea.vmem [#allocation7], 8
      %169 = vst [vmem:[%s168] sm:$0xff] %v167
    $region49: #{tpu_custom_call.1} parent=1 // pred_fallthru
      _
    // Predicated region
    $region50: #{tpu_custom_call.1} parent=1 // pred_check
      _
    $region51: #{tpu_custom_call.1} parent=1 // pred_check_branch
      %171 = sbr.rel (0) target = $region53
    $region52: #{tpu_custom_call.1} parent=1 // pred_region
      %s173 = ssub.s32 256, 256
      %174 = vsyncadd [#allocation6], %s173
      %s175 = sshll.u32 [#allocation7], 4
      %s176 = int_to_ptr.vmem [resolvable:$true] %s175
      %181 = dma.vmem_to_hbm [thread:$0]  %s176, 256, %s2, [#allocation6], 128, 128, 8
    $region53: #{tpu_custom_call.1} parent=1 // pred_fallthru
      _
    // Predicated region
    $region54: #{tpu_custom_call.1} parent=1 // pred_check
      _
    $region55: #{tpu_custom_call.1} parent=1 // pred_check_branch
      %183 = sbr.rel (0) target = $region57
    $region56: #{tpu_custom_call.1} parent=1 // pred_region
      %184 = dma.done [#allocation6], 256
    $region57: #{tpu_custom_call.1} parent=1 // pred_fallthru
      _
    %185 = vsyncpa [#allocation5], 1
    %186 = vsyncpa [#allocation6], 1

</llo_original>
